<compile_context>
chip_gen: v6e
topology: v6e:2x2x1
jax: 0.10.0
libtpu: 0.0.40
codegen_flags: <defaults>
</compile_context>

<pallas_src>
import functools
from typing import NamedTuple

import jax
import jax.numpy as jnp
from jax.experimental import pallas as pl
from jax.experimental.pallas import tpu as pltpu

LN_EPS = 1e-5      # PyTorch nn.LayerNorm default eps
LANE = 128
SUBLANE = 8
TILE_B_MAX = 512   # batch rows per grid step (multiple of 8)


def _round_up(x, m):
    return ((x + m - 1) // m) * m


# ----------------------------------------------------------------------------
# Parameter packing (done once, outside the kernel)
# ----------------------------------------------------------------------------
class PackedActorParams(NamedTuple):
    w1: jax.Array    # (s_size, H1)  zero-padded columns
    w2: jax.Array    # (H1, H2)      zero-padded rows/cols
    wmu: jax.Array   # (H2, A)       zero-padded rows/cols
    vec: jax.Array   # (8, W) rows: b1, g1, be1, b2, g2, be2, bmu, <unused>
    s_size: int
    lyr1: int
    lyr2: int
    a_size: int
    H1: int
    H2: int
    A: int


def pack_params(params):
    (w1, b1, g1, be1, w2, b2, g2, be2, wmu, bmu) = params
    s_size, lyr1 = w1.shape
    lyr2 = w2.shape[1]
    a_size = wmu.shape[1]
    H1 = _round_up(lyr1, LANE)
    H2 = _round_up(lyr2, LANE)
    A = _round_up(a_size, LANE)
    W = max(H1, H2, A)

    def pad2(a, rows, cols):
        a = a.astype(jnp.float32)
        return jnp.pad(a, ((0, rows - a.shape[0]), (0, cols - a.shape[1])))

    w1p = pad2(w1, s_size, H1)
    w2p = pad2(w2, H1, H2)
    wmup = pad2(wmu, H2, A)

    def row(v, width):
        v = v.reshape(1, -1).astype(jnp.float32)
        return jnp.pad(v, ((0, 0), (0, width - v.shape[1])))

    vec = jnp.concatenate(
        [row(b1, W), row(g1, W), row(be1, W),
         row(b2, W), row(g2, W), row(be2, W),
         row(bmu, W), jnp.zeros((1, W), jnp.float32)],
        axis=0)  # (8, W)

    return PackedActorParams(w1p, w2p, wmup, vec,
                             s_size, lyr1, lyr2, a_size, H1, H2, A)


# ----------------------------------------------------------------------------
# Kernel
# ----------------------------------------------------------------------------
def _layernorm_onepass(h, gamma, beta, inv_n):
    # Padded lanes of h are exactly zero, so sums over the padded width equal
    # sums over the true width; divisor inv_n is 1/true_width.
    s = jnp.sum(h, axis=-1, keepdims=True)
    ss = jnp.sum(h * h, axis=-1, keepdims=True)
    mean = s * inv_n
    var = jnp.maximum(ss * inv_n - mean * mean, 0.0)
    # gamma/beta are zero in padded lanes -> padded lanes stay exactly 0.
    return (h - mean) * jax.lax.rsqrt(var + LN_EPS) * gamma + beta


def _actor_kernel(x_ref, w1_ref, w2_ref, wmu_ref, vec_ref, out_ref, *,
                  lyr1, lyr2, H1, H2, A):
    x = x_ref[...]

    b1, g1, be1 = vec_ref[0:1, :H1], vec_ref[1:2, :H1], vec_ref[2:3, :H1]
    b2, g2, be2 = vec_ref[3:4, :H2], vec_ref[4:5, :H2], vec_ref[5:6, :H2]
    bmu = vec_ref[6:7, :A]

    # linear1 + LayerNorm + relu
    h = jnp.dot(x, w1_ref[...], preferred_element_type=jnp.float32) + b1
    h = jnp.maximum(_layernorm_onepass(h, g1, be1, 1.0 / lyr1), 0.0)

    # linear2 + LayerNorm + relu
    h = jnp.dot(h, w2_ref[...], preferred_element_type=jnp.float32) + b2
    h = jnp.maximum(_layernorm_onepass(h, g2, be2, 1.0 / lyr2), 0.0)

    # mu head + tanh  (lane-dense 128-multiple-wide store; padded lanes stay 0)
    mu = jnp.dot(h, wmu_ref[...], preferred_element_type=jnp.float32) + bmu
    out_ref[...] = jnp.tanh(mu).astype(out_ref.dtype)


# ----------------------------------------------------------------------------
# Wrapper
# ----------------------------------------------------------------------------
def actor_forward(state, packed: PackedActorParams):
    B = state.shape[0]
    s_size = packed.s_size
    H1, H2, A = packed.H1, packed.H2, packed.A
    W = packed.vec.shape[1]

    tile_b = min(TILE_B_MAX, _round_up(B, SUBLANE))
    b_pad = _round_up(B, tile_b)
    num_tiles = b_pad // tile_b

    state_p = state.astype(jnp.float32)
    if b_pad != B:
        state_p = jnp.pad(state_p, ((0, b_pad - B), (0, 0)))

    kernel = functools.partial(
        _actor_kernel, lyr1=packed.lyr1, lyr2=packed.lyr2, H1=H1, H2=H2, A=A)

    flops = 2 * b_pad * (s_size * H1 + H1 * H2 + H2 * A)
    transcendentals = b_pad * (2 + A)        # rsqrt per LN row + tanh per lane
    bytes_accessed = 4 * (b_pad * s_size + s_size * H1 + H1 * H2 + H2 * A
                          + 8 * W + b_pad * A)

    out = pl.pallas_call(
        kernel,
        out_shape=jax.ShapeDtypeStruct((b_pad, A), jnp.float32),
        grid=(num_tiles,),
        in_specs=[
            # streamed activation tile (double-buffered across grid steps)
            pl.BlockSpec((tile_b, s_size), lambda i: (i, 0)),
            # weights / packed vectors: constant index map -> VMEM-resident
            pl.BlockSpec((s_size, H1), lambda i: (0, 0)),
            pl.BlockSpec((H1, H2), lambda i: (0, 0)),
            pl.BlockSpec((H2, A), lambda i: (0, 0)),
            pl.BlockSpec((8, W), lambda i: (0, 0)),
        ],
        out_specs=pl.BlockSpec((tile_b, A), lambda i: (i, 0)),
        compiler_params=pltpu.CompilerParams(
            dimension_semantics=("parallel",),
            vmem_limit_bytes=32 * 1024 * 1024,
        ),
        cost_estimate=pl.CostEstimate(
            flops=flops,
            transcendentals=transcendentals,
            bytes_accessed=bytes_accessed,
        ),
    )(state_p, packed.w1, packed.w2, packed.wmu, packed.vec)

    return out[:B, :packed.a_size]


# ----------------------------------------------------------------------------
# Init + plain-JAX reference
# ----------------------------------------------------------------------------
def init_params(key, s_size, lyr1, lyr2, a_size):
    """Deterministic init mimicking PyTorch Linear defaults (uniform +-1/sqrt(fan_in))."""
    ks = jax.random.split(key, 6)

    def linear(kw, kb, fan_in, fan_out):
        bound = 1.0 / jnp.sqrt(fan_in)
        # stored as (in, out) so the kernel computes x @ W (== torch x @ W.T + b)
        w = jax.random.uniform(kw, (fan_in, fan_out), jnp.float32, -bound, bound)
        b = jax.random.uniform(kb, (1, fan_out), jnp.float32, -bound, bound)
        return w, b

    w1, b1 = linear(ks[0], ks[1], s_size, lyr1)
    w2, b2 = linear(ks[2], ks[3], lyr1, lyr2)
    wmu, bmu = linear(ks[4], ks[5], lyr2, a_size)

    # LayerNorm affine params: weight=1, bias=0 (PyTorch default)
    g1, be1 = jnp.ones((1, lyr1), jnp.float32), jnp.zeros((1, lyr1), jnp.float32)
    g2, be2 = jnp.ones((1, lyr2), jnp.float32), jnp.zeros((1, lyr2), jnp.float32)

    return (w1, b1, g1, be1, w2, b2, g2, be2, wmu, bmu)


def _layernorm_ref(h, gamma, beta):
    mean = jnp.mean(h, axis=-1, keepdims=True)
    var = jnp.mean(jnp.square(h - mean), axis=-1, keepdims=True)
    return (h - mean) * jax.lax.rsqrt(var + LN_EPS) * gamma + beta


def actor_forward_ref(state, params):
    (w1, b1, g1, be1, w2, b2, g2, be2, wmu, bmu) = params
    h = state @ w1 + b1
    h = jnp.maximum(_layernorm_ref(h, g1, be1), 0.0)
    h = h @ w2 + b2
    h = jnp.maximum(_layernorm_ref(h, g2, be2), 0.0)
    return jnp.tanh(h @ wmu + bmu)


if __name__ == "__main__":
    # Small shapes consistent with the module's forward.
    batch, s_size, lyr1, lyr2, a_size = 4, 16, 32, 32, 8

    key = jax.random.PRNGKey(0)
    k_state, k_params = jax.random.split(key)

    state = jax.random.normal(k_state, (batch, s_size), jnp.float32)
    params = init_params(k_params, s_size, lyr1, lyr2, a_size)
    packed = pack_params(params)

    mu = actor_forward(state, packed)
    mu = jax.block_until_ready(mu)

    mu_ref = actor_forward_ref(state, params)
    assert mu.shape == (batch, a_size)
    assert jnp.allclose(mu, mu_ref, atol=1e-4, rtol=1e-4), "mismatch vs JAX reference"

    print("KERNEL_OK")
</pallas_src>

<mosaic_0001>
module attributes {stable_mosaic.version = 11 : i64} {
  func.func @_actor_kernel(%arg0: i32, %arg1: memref<8x16xf32, #tpu.memory_space<vmem>>, %arg2: memref<16x128xf32, #tpu.memory_space<vmem>>, %arg3: memref<128x128xf32, #tpu.memory_space<vmem>>, %arg4: memref<128x128xf32, #tpu.memory_space<vmem>>, %arg5: memref<8x128xf32, #tpu.memory_space<vmem>>, %arg6: memref<8x128xf32, #tpu.memory_space<vmem>>) attributes {dimension_semantics = [#tpu.dimension_semantics<parallel>], iteration_bounds = array<i64: 1>, scalar_prefetch = 0 : i64, scratch_operands = 0 : i64, tpu.core_type = #tpu.core_type<tc>, window_params = [{transform_indices = @transform_0, window_bounds = array<i64: 8, 16>}, {pipeline_mode = #tpu.pipeline_mode<synchronous>, transform_indices = @transform_1, window_bounds = array<i64: 16, 128>}, {pipeline_mode = #tpu.pipeline_mode<synchronous>, transform_indices = @transform_2, window_bounds = array<i64: 128, 128>}, {pipeline_mode = #tpu.pipeline_mode<synchronous>, transform_indices = @transform_3, window_bounds = array<i64: 128, 128>}, {pipeline_mode = #tpu.pipeline_mode<synchronous>, transform_indices = @transform_4, window_bounds = array<i64: 8, 128>}, {transform_indices = @transform_5, window_bounds = array<i64: 8, 128>}]} {
    %c0 = arith.constant 0 : index
    %c0_0 = arith.constant 0 : index
    %0 = vector.load %arg1[%c0, %c0_0] : memref<8x16xf32, #tpu.memory_space<vmem>>, vector<8x16xf32>
    %c0_1 = arith.constant 0 : index
    %c0_2 = arith.constant 0 : index
    %1 = vector.load %arg5[%c0_1, %c0_2] : memref<8x128xf32, #tpu.memory_space<vmem>>, vector<1x128xf32>
    %c1 = arith.constant 1 : index
    %c0_3 = arith.constant 0 : index
    %2 = vector.load %arg5[%c1, %c0_3] : memref<8x128xf32, #tpu.memory_space<vmem>>, vector<1x128xf32>
    %c2 = arith.constant 2 : index
    %c0_4 = arith.constant 0 : index
    %3 = vector.load %arg5[%c2, %c0_4] : memref<8x128xf32, #tpu.memory_space<vmem>>, vector<1x128xf32>
    %c3 = arith.constant 3 : index
    %c0_5 = arith.constant 0 : index
    %4 = vector.load %arg5[%c3, %c0_5] : memref<8x128xf32, #tpu.memory_space<vmem>>, vector<1x128xf32>
    %c4 = arith.constant 4 : index
    %c0_6 = arith.constant 0 : index
    %5 = vector.load %arg5[%c4, %c0_6] : memref<8x128xf32, #tpu.memory_space<vmem>>, vector<1x128xf32>
    %c5 = arith.constant 5 : index
    %c0_7 = arith.constant 0 : index
    %6 = vector.load %arg5[%c5, %c0_7] : memref<8x128xf32, #tpu.memory_space<vmem>>, vector<1x128xf32>
    %c6 = arith.constant 6 : index
    %c0_8 = arith.constant 0 : index
    %7 = vector.load %arg5[%c6, %c0_8] : memref<8x128xf32, #tpu.memory_space<vmem>>, vector<1x128xf32>
    %c0_9 = arith.constant 0 : index
    %c0_10 = arith.constant 0 : index
    %8 = vector.load %arg2[%c0_9, %c0_10] : memref<16x128xf32, #tpu.memory_space<vmem>>, vector<16x128xf32>
    %cst = arith.constant dense<0.000000e+00> : vector<8x128xf32>
    %9 = tpu.matmul %0, %8, %cst {dimension_numbers = #tpu.dot_dimension_numbers<[1], [0], [0], [1], [0, 0, 1, 1], [], []>} : vector<8x16xf32>, vector<16x128xf32>, vector<8x128xf32> -> vector<8x128xf32>
    %10 = vector.broadcast %1 : vector<1x128xf32> to vector<8x128xf32>
    %11 = arith.addf %9, %10 : vector<8x128xf32>
    %cst_11 = arith.constant dense<0.000000e+00> : vector<8xf32>
    %12 = vector.multi_reduction <add>, %11, %cst_11 [1] : vector<8x128xf32> to vector<8xf32>
    %13 = vector.shape_cast %12 : vector<8xf32> to vector<8x1xf32>
    %14 = arith.mulf %11, %11 : vector<8x128xf32>
    %cst_12 = arith.constant dense<0.000000e+00> : vector<8xf32>
    %15 = vector.multi_reduction <add>, %14, %cst_12 [1] : vector<8x128xf32> to vector<8xf32>
    %16 = vector.shape_cast %15 : vector<8xf32> to vector<8x1xf32>
    %cst_13 = arith.constant 3.125000e-02 : f32
    %17 = vector.broadcast %cst_13 : f32 to vector<8x1xf32>
    %18 = arith.mulf %13, %17 : vector<8x1xf32>
    %cst_14 = arith.constant 3.125000e-02 : f32
    %19 = vector.broadcast %cst_14 : f32 to vector<8x1xf32>
    %20 = arith.mulf %16, %19 : vector<8x1xf32>
    %21 = arith.mulf %18, %18 : vector<8x1xf32>
    %22 = arith.subf %20, %21 : vector<8x1xf32>
    %cst_15 = arith.constant 0.000000e+00 : f32
    %23 = vector.broadcast %cst_15 : f32 to vector<8x1xf32>
    %24 = arith.maximumf %22, %23 : vector<8x1xf32>
    %25 = vector.broadcast %18 : vector<8x1xf32> to vector<8x128xf32>
    %26 = arith.subf %11, %25 : vector<8x128xf32>
    %cst_16 = arith.constant 9.99999974E-6 : f32
    %27 = vector.broadcast %cst_16 : f32 to vector<8x1xf32>
    %28 = arith.addf %24, %27 : vector<8x1xf32>
    %29 = math.rsqrt %28 : vector<8x1xf32>
    %30 = vector.broadcast %29 : vector<8x1xf32> to vector<8x128xf32>
    %31 = arith.mulf %26, %30 : vector<8x128xf32>
    %32 = vector.broadcast %2 : vector<1x128xf32> to vector<8x128xf32>
    %33 = arith.mulf %31, %32 : vector<8x128xf32>
    %34 = vector.broadcast %3 : vector<1x128xf32> to vector<8x128xf32>
    %35 = arith.addf %33, %34 : vector<8x128xf32>
    %cst_17 = arith.constant 0.000000e+00 : f32
    %36 = vector.broadcast %cst_17 : f32 to vector<8x128xf32>
    %37 = arith.maximumf %35, %36 : vector<8x128xf32>
    %c0_18 = arith.constant 0 : index
    %c0_19 = arith.constant 0 : index
    %38 = vector.load %arg3[%c0_18, %c0_19] : memref<128x128xf32, #tpu.memory_space<vmem>>, vector<128x128xf32>
    %cst_20 = arith.constant dense<0.000000e+00> : vector<8x128xf32>
    %39 = tpu.matmul %37, %38, %cst_20 {dimension_numbers = #tpu.dot_dimension_numbers<[1], [0], [0], [1], [0, 0, 1, 1], [], []>} : vector<8x128xf32>, vector<128x128xf32>, vector<8x128xf32> -> vector<8x128xf32>
    %40 = vector.broadcast %4 : vector<1x128xf32> to vector<8x128xf32>
    %41 = arith.addf %39, %40 : vector<8x128xf32>
    %cst_21 = arith.constant dense<0.000000e+00> : vector<8xf32>
    %42 = vector.multi_reduction <add>, %41, %cst_21 [1] : vector<8x128xf32> to vector<8xf32>
    %43 = vector.shape_cast %42 : vector<8xf32> to vector<8x1xf32>
    %44 = arith.mulf %41, %41 : vector<8x128xf32>
    %cst_22 = arith.constant dense<0.000000e+00> : vector<8xf32>
    %45 = vector.multi_reduction <add>, %44, %cst_22 [1] : vector<8x128xf32> to vector<8xf32>
    %46 = vector.shape_cast %45 : vector<8xf32> to vector<8x1xf32>
    %cst_23 = arith.constant 3.125000e-02 : f32
    %47 = vector.broadcast %cst_23 : f32 to vector<8x1xf32>
    %48 = arith.mulf %43, %47 : vector<8x1xf32>
    %cst_24 = arith.constant 3.125000e-02 : f32
    %49 = vector.broadcast %cst_24 : f32 to vector<8x1xf32>
    %50 = arith.mulf %46, %49 : vector<8x1xf32>
    %51 = arith.mulf %48, %48 : vector<8x1xf32>
    %52 = arith.subf %50, %51 : vector<8x1xf32>
    %cst_25 = arith.constant 0.000000e+00 : f32
    %53 = vector.broadcast %cst_25 : f32 to vector<8x1xf32>
    %54 = arith.maximumf %52, %53 : vector<8x1xf32>
    %55 = vector.broadcast %48 : vector<8x1xf32> to vector<8x128xf32>
    %56 = arith.subf %41, %55 : vector<8x128xf32>
    %cst_26 = arith.constant 9.99999974E-6 : f32
    %57 = vector.broadcast %cst_26 : f32 to vector<8x1xf32>
    %58 = arith.addf %54, %57 : vector<8x1xf32>
    %59 = math.rsqrt %58 : vector<8x1xf32>
    %60 = vector.broadcast %59 : vector<8x1xf32> to vector<8x128xf32>
    %61 = arith.mulf %56, %60 : vector<8x128xf32>
    %62 = vector.broadcast %5 : vector<1x128xf32> to vector<8x128xf32>
    %63 = arith.mulf %61, %62 : vector<8x128xf32>
    %64 = vector.broadcast %6 : vector<1x128xf32> to vector<8x128xf32>
    %65 = arith.addf %63, %64 : vector<8x128xf32>
    %cst_27 = arith.constant 0.000000e+00 : f32
    %66 = vector.broadcast %cst_27 : f32 to vector<8x128xf32>
    %67 = arith.maximumf %65, %66 : vector<8x128xf32>
    %c0_28 = arith.constant 0 : index
    %c0_29 = arith.constant 0 : index
    %68 = vector.load %arg4[%c0_28, %c0_29] : memref<128x128xf32, #tpu.memory_space<vmem>>, vector<128x128xf32>
    %cst_30 = arith.constant dense<0.000000e+00> : vector<8x128xf32>
    %69 = tpu.matmul %67, %68, %cst_30 {dimension_numbers = #tpu.dot_dimension_numbers<[1], [0], [0], [1], [0, 0, 1, 1], [], []>} : vector<8x128xf32>, vector<128x128xf32>, vector<8x128xf32> -> vector<8x128xf32>
    %70 = vector.broadcast %7 : vector<1x128xf32> to vector<8x128xf32>
    %71 = arith.addf %69, %70 : vector<8x128xf32>
    %72 = math.tanh %71 : vector<8x128xf32>
    %c0_31 = arith.constant 0 : index
    %c0_32 = arith.constant 0 : index
    %73 = vector.load %arg6[%c0_31, %c0_32] : memref<8x128xf32, #tpu.memory_space<vmem>>, vector<8x128xf32>
    tpu.vector_store %arg6[%c0_31, %c0_32], %72 {strides = array<i32>} : memref<8x128xf32, #tpu.memory_space<vmem>>, vector<8x128xf32>,
    return
  }
  func.func @transform_0(%arg0: i32) -> (i32, i32) {
    %c0_i32 = arith.constant 0 : i32
    %c0_i32_0 = arith.constant 0 : i32
    return %arg0, %c0_i32 : i32, i32
  }
  func.func @transform_1(%arg0: i32) -> (i32, i32) {
    %c0_i32 = arith.constant 0 : i32
    %c0_i32_0 = arith.constant 0 : i32
    %c0_i32_1 = arith.constant 0 : i32
    return %c0_i32, %c0_i32_0 : i32, i32
  }
  func.func @transform_2(%arg0: i32) -> (i32, i32) {
    %c0_i32 = arith.constant 0 : i32
    %c0_i32_0 = arith.constant 0 : i32
    %c0_i32_1 = arith.constant 0 : i32
    return %c0_i32, %c0_i32_0 : i32, i32
  }
  func.func @transform_3(%arg0: i32) -> (i32, i32) {
    %c0_i32 = arith.constant 0 : i32
    %c0_i32_0 = arith.constant 0 : i32
    %c0_i32_1 = arith.constant 0 : i32
    return %c0_i32, %c0_i32_0 : i32, i32
  }
  func.func @transform_4(%arg0: i32) -> (i32, i32) {
    %c0_i32 = arith.constant 0 : i32
    %c0_i32_0 = arith.constant 0 : i32
    %c0_i32_1 = arith.constant 0 : i32
    return %c0_i32, %c0_i32_0 : i32, i32
  }
  func.func @transform_5(%arg0: i32) -> (i32, i32) {
    %c0_i32 = arith.constant 0 : i32
    %c0_i32_0 = arith.constant 0 : i32
    return %arg0, %c0_i32 : i32, i32
  }
}

</mosaic_0001>

<llo_original>
// kernel: tpu_custom_call.1
$region0: #{tpu_custom_call.1}
  #allocation0 [shape = 'u32[]', space=smem, size = 0x4, offset = 0x4, fixed_abs, tag = 'smem constant byte address 0x4 - core index']
  #allocation1 [shape = 'u32[144,128]{1,0:T(1,128)}', space=vmem, size = 0x12000, scoped, tag = 'internal scratch']
  %s0 = inlined_call_operand.hbm [shape: f32[8,16], index: 0, kind: input, shape index: {}]
  %s1 = inlined_call_operand.hbm [shape: f32[16,128], index: 1, kind: input, shape index: {}]
  %s2 = inlined_call_operand.hbm [shape: f32[128,128], index: 2, kind: input, shape index: {}]
  %s3 = inlined_call_operand.hbm [shape: f32[128,128], index: 3, kind: input, shape index: {}]
  %s4 = inlined_call_operand.hbm [shape: f32[8,128], index: 4, kind: input, shape index: {}]
  %s5 = inlined_call_operand.hbm [shape: f32[8,128], index: 5, kind: output, shape index: {}]
  %s6 = sld [smem:[#allocation0]]
  $region50: #{tpu_custom_call.1} parent=0
    _
  %s8 = ssub.s32 1, %s6
  %s9 = scalar_select 0, %s8, %s6
  $region1: #{tpu_custom_call.1} parent=0
    #allocation2 [shape = 'u8[4096]{0}', space=vmem, size = 0x1000, scoped, tag = 'input window, operand 0, single buffered']
    #allocation3 [shape = 's32[1]{0}', space=sflag, size = 0x4, scoped, tag = 'scoped memory for tpu_custom_call.1']
    #allocation4 [shape = 's32[1]{0}', space=sflag, size = 0x4, scoped, tag = 'scoped memory for tpu_custom_call.1']
    #allocation5 [shape = 'u8[8192]{0}', space=vmem, size = 0x2000, scoped, tag = 'input window, operand 1, single buffered']
    #allocation6 [shape = 's32[1]{0}', space=sflag, size = 0x4, scoped, tag = 'scoped memory for tpu_custom_call.1']
    #allocation7 [shape = 'u8[65536]{0}', space=vmem, size = 0x10000, scoped, tag = 'input window, operand 2, single buffered']
    #allocation8 [shape = 'u8[65536]{0}', space=vmem, size = 0x10000, scoped, tag = 'input window, operand 3, single buffered']
    #allocation9 [shape = 's32[1]{0}', space=sflag, size = 0x4, scoped, tag = 'scoped memory for tpu_custom_call.1']
    #allocation10 [shape = 'u8[4096]{0}', space=vmem, size = 0x1000, scoped, tag = 'input window, operand 4, single buffered']
    #allocation11 [shape = 'u8[4096]{0}', space=vmem, size = 0x1000, scoped, tag = 'output window, operand 0, single buffered']
    %10 = vsyncpa [#allocation3], 0
    %11 = vsyncpa [#allocation6], 0
    %12 = vsyncpa [#allocation9], 0
    %13 = vsyncpa [#allocation4], 0
    // Predicated region
    $region2: #{tpu_custom_call.1} parent=1 // pred_check
      _
    $region3: #{tpu_custom_call.1} parent=1 // pred_check_branch
      %15 = sbr.rel (0) target = $region5
    $region4: #{tpu_custom_call.1} parent=1 // pred_region
      %s17 = ssub.s32 128, 128
      %18 = vsyncadd [#allocation3], %s17
      %s20 = sshll.u32 [#allocation2], 4
      %s21 = int_to_ptr.vmem [resolvable:$true] %s20
      %23 = dma.hbm_to_vmem [thread:$0]  %s0, 128, %s21, [#allocation3]
    $region5: #{tpu_custom_call.1} parent=1 // pred_fallthru
      _
    // Predicated region
    $region6: #{tpu_custom_call.1} parent=1 // pred_check
      _
    $region7: #{tpu_custom_call.1} parent=1 // pred_check_branch
      %25 = sbr.rel (0) target = $region9
    $region8: #{tpu_custom_call.1} parent=1 // pred_region
      %s27 = ssub.s32 256, 256
      %28 = vsyncadd [#allocation6], %s27
      %s29 = sshll.u32 [#allocation5], 4
      %s30 = int_to_ptr.vmem [resolvable:$true] %s29
      %35 = dma.hbm_to_vmem [thread:$0]  %s1, 256, %s30, [#allocation6], 128, 128, 8
    $region9: #{tpu_custom_call.1} parent=1 // pred_fallthru
      _
    // Predicated region
    $region10: #{tpu_custom_call.1} parent=1 // pred_check
      _
    $region11: #{tpu_custom_call.1} parent=1 // pred_check_branch
      %37 = sbr.rel (0) target = $region13
    $region12: #{tpu_custom_call.1} parent=1 // pred_region
      %s39 = ssub.s32 2048, 2048
      %40 = vsyncadd [#allocation6], %s39
      %s41 = sshll.u32 [#allocation7], 4
      %s42 = int_to_ptr.vmem [resolvable:$true] %s41
      %47 = dma.hbm_to_vmem [thread:$0]  %s2, 2048, %s42, [#allocation6], 128, 128, 8
    $region13: #{tpu_custom_call.1} parent=1 // pred_fallthru
      _
    // Predicated region
    $region14: #{tpu_custom_call.1} parent=1 // pred_check
      _
    $region15: #{tpu_custom_call.1} parent=1 // pred_check_branch
      %49 = sbr.rel (0) target = $region17
    $region16: #{tpu_custom_call.1} parent=1 // pred_region
      %s51 = ssub.s32 2048, 2048
      %52 = vsyncadd [#allocation9], %s51
      %s53 = sshll.u32 [#allocation8], 4
      %s54 = int_to_ptr.vmem [resolvable:$true] %s53
      %59 = dma.hbm_to_vmem [thread:$0]  %s3, 2048, %s54, [#allocation9], 128, 128, 8
    $region17: #{tpu_custom_call.1} parent=1 // pred_fallthru
      _
    // Predicated region
    $region18: #{tpu_custom_call.1} parent=1 // pred_check
      _
    $region19: #{tpu_custom_call.1} parent=1 // pred_check_branch
      %61 = sbr.rel (0) target = $region21
    $region20: #{tpu_custom_call.1} parent=1 // pred_region
      %s63 = ssub.s32 128, 128
      %64 = vsyncadd [#allocation9], %s63
      %s66 = sshll.u32 [#allocation10], 4
      %s67 = int_to_ptr.vmem [resolvable:$true] %s66
      %69 = dma.hbm_to_vmem [thread:$0]  %s4, 128, %s67, [#allocation9]
    $region21: #{tpu_custom_call.1} parent=1 // pred_fallthru
      _
    // Predicated region
    $region22: #{tpu_custom_call.1} parent=1 // pred_check
      _
    $region23: #{tpu_custom_call.1} parent=1 // pred_check_branch
      %71 = sbr.rel (0) target = $region25
    $region24: #{tpu_custom_call.1} parent=1 // pred_region
      %72 = dma.done [#allocation3], 128
    $region25: #{tpu_custom_call.1} parent=1 // pred_fallthru
      _
    // Predicated region
    $region26: #{tpu_custom_call.1} parent=1 // pred_check
      _
    $region27: #{tpu_custom_call.1} parent=1 // pred_check_branch
      %74 = sbr.rel (0) target = $region29
    $region28: #{tpu_custom_call.1} parent=1 // pred_region
      %75 = dma.done [#allocation6], 256
    $region29: #{tpu_custom_call.1} parent=1 // pred_fallthru
      _
    // Predicated region
    $region30: #{tpu_custom_call.1} parent=1 // pred_check
      _
    $region31: #{tpu_custom_call.1} parent=1 // pred_check_branch
      %77 = sbr.rel (0) target = $region33
    $region32: #{tpu_custom_call.1} parent=1 // pred_region
      %78 = dma.done [#allocation6], 2048
    $region33: #{tpu_custom_call.1} parent=1 // pred_fallthru
      _
    // Predicated region
    $region34: #{tpu_custom_call.1} parent=1 // pred_check
      _
    $region35: #{tpu_custom_call.1} parent=1 // pred_check_branch
      %80 = sbr.rel (0) target = $region37
    $region36: #{tpu_custom_call.1} parent=1 // pred_region
      %81 = dma.done [#allocation9], 2048
    $region37: #{tpu_custom_call.1} parent=1 // pred_fallthru
      _
    // Predicated region
    $region38: #{tpu_custom_call.1} parent=1 // pred_check
      _
    $region39: #{tpu_custom_call.1} parent=1 // pred_check_branch
      %83 = sbr.rel (0) target = $region41
    $region40: #{tpu_custom_call.1} parent=1 // pred_region
      %84 = dma.done [#allocation9], 128
    $region41: #{tpu_custom_call.1} parent=1 // pred_fallthru
      _
    %v85 = vld [vmem:[#allocation2] sm:$0xff]
    %v86 = vld [vmem:[#allocation10] sm:$0x1]
    %v87 = vld [vmem:[#allocation10 + $0x1] sm:$0x1]
    %v88 = vld [vmem:[#allocation10 + $0x2] sm:$0x1]
    %v89 = vld [vmem:[#allocation10 + $0x3] sm:$0x1]
    %v90 = vld [vmem:[#allocation10 + $0x4] sm:$0x1]
    %v91 = vld [vmem:[#allocation10 + $0x5] sm:$0x1]
    %v92 = vld [vmem:[#allocation10 + $0x6] sm:$0x1]
    %v93 = vld [vmem:[#allocation5] sm:$0xff]
    %v94 = vld [vmem:[#allocation5 + $0x8] sm:$0xff]
    %v95 = vlaneseq
    %v96 = vshrl.u32 %v95, 7
    %v97 = vsub.s32 0, %v96
    %v98 = vrot.slane %v86, %v97
    %vm99 = vcmask 130048
    %v101 = vsel %vm99, %v85, 0
    %103 = vmatprep.subr.mxu0 0.0
    %104 = vmatpush1.msra.mxu0 0.0
    %105 = vmatprep.subr.mxu0 0.0
    %106 = vmatpush1.msra.mxu0 0.0
    %107 = vmatprep.subr.mxu0 0.0
    %108 = vmatpush1.msra.mxu0 0.0
    %109 = vmatprep.subr.mxu0 0.0
    %110 = vmatpush1.msra.mxu0 0.0
    %111 = vmatprep.subr.mxu0 0.0
    %112 = vmatpush1.msra.mxu0 0.0
    %113 = vmatprep.subr.mxu0 0.0
    %114 = vmatpush1.msra.mxu0 0.0
    %115 = vmatprep.subr.mxu0 0.0
    %116 = vmatpush1.msra.mxu0 0.0
    %117 = vmatprep.subr.mxu0 0.0
    %118 = vmatpush1.msra.mxu0 0.0
    %119 = vmatprep.subr.mxu0 0.0
    %120 = vmatpush1.msra.mxu0 0.0
    %121 = vmatprep.subr.mxu0 0.0
    %122 = vmatpush1.msra.mxu0 0.0
    %123 = vmatprep.subr.mxu0 0.0
    %124 = vmatpush1.msra.mxu0 0.0
    %125 = vmatprep.subr.mxu0 0.0
    %126 = vmatpush1.msra.mxu0 0.0
    %127 = vmatprep.subr.mxu0 0.0
    %128 = vmatpush1.msra.mxu0 0.0
    %129 = vmatprep.subr.mxu0 0.0
    %130 = vmatpush1.msra.mxu0 0.0
    %131 = vmatprep.subr.mxu0 0.0
    %132 = vmatpush1.msra.mxu0 %v94
    %133 = vmatprep.subr.mxu0 0.0
    %134 = vmatpush1.msra.mxu0 %v93
    %135 = vmatprep.subr.mxu0 0.0
    %136 = vmatpush2.msra.mxu0 0.0
    %137 = vmatprep.subr.mxu0 0.0
    %138 = vmatpush2.msra.mxu0 0.0
    %139 = vmatprep.subr.mxu0 0.0
    %140 = vmatpush2.msra.mxu0 0.0
    %141 = vmatprep.subr.mxu0 0.0
    %142 = vmatpush2.msra.mxu0 0.0
    %143 = vmatprep.subr.mxu0 0.0
    %144 = vmatpush2.msra.mxu0 0.0
    %145 = vmatprep.subr.mxu0 0.0
    %146 = vmatpush2.msra.mxu0 0.0
    %147 = vmatprep.subr.mxu0 0.0
    %148 = vmatpush2.msra.mxu0 0.0
    %149 = vmatprep.subr.mxu0 0.0
    %150 = vmatpush2.msra.mxu0 0.0
    %151 = vmatprep.subr.mxu0 0.0
    %152 = vmatpush2.msra.mxu0 0.0
    %153 = vmatprep.subr.mxu0 0.0
    %154 = vmatpush2.msra.mxu0 0.0
    %155 = vmatprep.subr.mxu0 0.0
    %156 = vmatpush2.msra.mxu0 0.0
    %157 = vmatprep.subr.mxu0 0.0
    %158 = vmatpush2.msra.mxu0 0.0
    %159 = vmatprep.subr.mxu0 0.0
    %160 = vmatpush2.msra.mxu0 0.0
    %161 = vmatprep.subr.mxu0 0.0
    %162 = vmatpush2.msra.mxu0 0.0
    %163 = vmatprep.subr.mxu0 0.0
    %164 = vmatpush2.msra.mxu0 0.0
    %165 = vmatprep.subr.mxu0 0.0
    %166 = vmatpush2.msra.mxu0 0.0
    %167 = vmatprep.mubr.f32.mxu0 0.0
    %168 = vmatmul.mubr.f32.gmra.mxu0 %v101
    %v169 = vpop.f32.mrf.mxu0
    %v170 = vadd.f32 %v98, %v169
    %v171 = vpop.f32.mrf.mxu0
    %172 = vdwg.mxu0
    %173 = vadd.xlane.f32.xlu0 %v170
    %v174 = vpop.xlane.xlu0 %173
    %v175 = vmul.f32 %v170, %v170
    %176 = vadd.xlane.f32.xlu0 %v175
    %v177 = vpop.xlane.xlu0 %176
    %v178 = vmul.f32 %v174, 0.03125
    %v179 = vmul.f32 %v177, 0.03125
    %v180 = vmul.f32 %v178, %v178
    %v181 = vsub.f32 %v179, %v180
    %v182 = vmax.f32 %v181, 0.0
    %v183 = vsub.f32 %v170, %v178
    %v184 = vadd.f32 %v182, 1e-05
    %v185 = vrsqrt.pop %v184
    %v186 = vmul.f32 %v183, %v185
    %v187 = vlaneseq
    %v188 = vshrl.u32 %v187, 7
    %v189 = vsub.s32 0, %v188
    %v190 = vrot.slane %v87, %v189
    %v191 = vmul.f32 %v186, %v190
    %v192 = vlaneseq
    %v193 = vshrl.u32 %v192, 7
    %v194 = vsub.s32 0, %v193
    %v195 = vrot.slane %v88, %v194
    %v196 = vadd.f32 %v191, %v195
    %v197 = vmax.f32 %v196, 0.0
    %v198 = vld [vmem:[#allocation7] sm:$0xff]
    %v199 = vld [vmem:[#allocation7 + $0x8] sm:$0xff]
    %v200 = vld [vmem:[#allocation7 + $0x10] sm:$0xff]
    %v201 = vld [vmem:[#allocation7 + $0x18] sm:$0xff]
    %v202 = vld [vmem:[#allocation7 + $0x20] sm:$0xff]
    %v203 = vld [vmem:[#allocation7 + $0x28] sm:$0xff]
    %v204 = vld [vmem:[#allocation7 + $0x30] sm:$0xff]
    %v205 = vld [vmem:[#allocation7 + $0x38] sm:$0xff]
    %v206 = vld [vmem:[#allocation7 + $0x40] sm:$0xff]
    %v207 = vld [vmem:[#allocation7 + $0x48] sm:$0xff]
    %v208 = vld [vmem:[#allocation7 + $0x50] sm:$0xff]
    %v209 = vld [vmem:[#allocation7 + $0x58] sm:$0xff]
    %v210 = vld [vmem:[#allocation7 + $0x60] sm:$0xff]
    %v211 = vld [vmem:[#allocation7 + $0x68] sm:$0xff]
    %v212 = vld [vmem:[#allocation7 + $0x70] sm:$0xff]
    %v213 = vld [vmem:[#allocation7 + $0x78] sm:$0xff]
    %v214 = vlaneseq
    %v215 = vshrl.u32 %v214, 7
    %v216 = vsub.s32 0, %v215
    %v217 = vrot.slane %v89, %v216
    %218 = vmatprep.subr.mxu0 0.0
    %219 = vmatpush1.msra.mxu0 %v213
    %220 = vmatprep.subr.mxu0 0.0
    %221 = vmatpush1.msra.mxu0 %v212
    %222 = vmatprep.subr.mxu0 0.0
    %223 = vmatpush1.msra.mxu0 %v211
    %224 = vmatprep.subr.mxu0 0.0
    %225 = vmatpush1.msra.mxu0 %v210
    %226 = vmatprep.subr.mxu0 0.0
    %227 = vmatpush1.msra.mxu0 %v209
    %228 = vmatprep.subr.mxu0 0.0
    %229 = vmatpush1.msra.mxu0 %v208
    %230 = vmatprep.subr.mxu0 0.0
    %231 = vmatpush1.msra.mxu0 %v207
    %232 = vmatprep.subr.mxu0 0.0
    %233 = vmatpush1.msra.mxu0 %v206
    %234 = vmatprep.subr.mxu0 0.0
    %235 = vmatpush1.msra.mxu0 %v205
    %236 = vmatprep.subr.mxu0 0.0
    %237 = vmatpush1.msra.mxu0 %v204
    %238 = vmatprep.subr.mxu0 0.0
    %239 = vmatpush1.msra.mxu0 %v203
    %240 = vmatprep.subr.mxu0 0.0
    %241 = vmatpush1.msra.mxu0 %v202
    %242 = vmatprep.subr.mxu0 0.0
    %243 = vmatpush1.msra.mxu0 %v201
    %244 = vmatprep.subr.mxu0 0.0
    %245 = vmatpush1.msra.mxu0 %v200
    %246 = vmatprep.subr.mxu0 0.0
    %247 = vmatpush1.msra.mxu0 %v199
    %248 = vmatprep.subr.mxu0 0.0
    %249 = vmatpush1.msra.mxu0 %v198
    %250 = vmatprep.subr.mxu0 0.0
    %251 = vmatpush2.msra.mxu0 0.0
    %252 = vmatprep.subr.mxu0 0.0
    %253 = vmatpush2.msra.mxu0 0.0
    %254 = vmatprep.subr.mxu0 0.0
    %255 = vmatpush2.msra.mxu0 0.0
    %256 = vmatprep.subr.mxu0 0.0
    %257 = vmatpush2.msra.mxu0 0.0
    %258 = vmatprep.subr.mxu0 0.0
    %259 = vmatpush2.msra.mxu0 0.0
    %260 = vmatprep.subr.mxu0 0.0
    %261 = vmatpush2.msra.mxu0 0.0
    %262 = vmatprep.subr.mxu0 0.0
    %263 = vmatpush2.msra.mxu0 0.0
    %264 = vmatprep.subr.mxu0 0.0
    %265 = vmatpush2.msra.mxu0 0.0
    %266 = vmatprep.subr.mxu0 0.0
    %267 = vmatpush2.msra.mxu0 0.0
    %268 = vmatprep.subr.mxu0 0.0
    %269 = vmatpush2.msra.mxu0 0.0
    %270 = vmatprep.subr.mxu0 0.0
    %271 = vmatpush2.msra.mxu0 0.0
    %272 = vmatprep.subr.mxu0 0.0
    %273 = vmatpush2.msra.mxu0 0.0
    %274 = vmatprep.subr.mxu0 0.0
    %275 = vmatpush2.msra.mxu0 0.0
    %276 = vmatprep.subr.mxu0 0.0
    %277 = vmatpush2.msra.mxu0 0.0
    %278 = vmatprep.subr.mxu0 0.0
    %279 = vmatpush2.msra.mxu0 0.0
    %280 = vmatprep.subr.mxu0 0.0
    %281 = vmatpush2.msra.mxu0 0.0
    %282 = vmatprep.mubr.f32.mxu0 0.0
    %283 = vmatmul.mubr.f32.gmra.mxu0 %v197
    %v284 = vpop.f32.mrf.mxu0
    %v285 = vadd.f32 %v217, %v284
    %v286 = vpop.f32.mrf.mxu0
    %287 = vdwg.mxu0
    %288 = vadd.xlane.f32.xlu0 %v285
    %v289 = vpop.xlane.xlu0 %288
    %v290 = vmul.f32 %v285, %v285
    %291 = vadd.xlane.f32.xlu0 %v290
    %v292 = vpop.xlane.xlu0 %291
    %v293 = vmul.f32 %v289, 0.03125
    %v294 = vmul.f32 %v292, 0.03125
    %v295 = vmul.f32 %v293, %v293
    %v296 = vsub.f32 %v294, %v295
    %v297 = vmax.f32 %v296, 0.0
    %v298 = vsub.f32 %v285, %v293
    %v299 = vadd.f32 %v297, 1e-05
    %v300 = vrsqrt.pop %v299
    %v301 = vmul.f32 %v298, %v300
    %v302 = vlaneseq
    %v303 = vshrl.u32 %v302, 7
    %v304 = vsub.s32 0, %v303
    %v305 = vrot.slane %v90, %v304
    %v306 = vmul.f32 %v301, %v305
    %v307 = vlaneseq
    %v308 = vshrl.u32 %v307, 7
    %v309 = vsub.s32 0, %v308
    %v310 = vrot.slane %v91, %v309
    %v311 = vadd.f32 %v306, %v310
    %v312 = vmax.f32 %v311, 0.0
    %v313 = vld [vmem:[#allocation8] sm:$0xff]
    %v314 = vld [vmem:[#allocation8 + $0x8] sm:$0xff]
    %v315 = vld [vmem:[#allocation8 + $0x10] sm:$0xff]
    %v316 = vld [vmem:[#allocation8 + $0x18] sm:$0xff]
    %v317 = vld [vmem:[#allocation8 + $0x20] sm:$0xff]
    %v318 = vld [vmem:[#allocation8 + $0x28] sm:$0xff]
    %v319 = vld [vmem:[#allocation8 + $0x30] sm:$0xff]
    %v320 = vld [vmem:[#allocation8 + $0x38] sm:$0xff]
    %v321 = vld [vmem:[#allocation8 + $0x40] sm:$0xff]
    %v322 = vld [vmem:[#allocation8 + $0x48] sm:$0xff]
    %v323 = vld [vmem:[#allocation8 + $0x50] sm:$0xff]
    %v324 = vld [vmem:[#allocation8 + $0x58] sm:$0xff]
    %v325 = vld [vmem:[#allocation8 + $0x60] sm:$0xff]
    %v326 = vld [vmem:[#allocation8 + $0x68] sm:$0xff]
    %v327 = vld [vmem:[#allocation8 + $0x70] sm:$0xff]
    %v328 = vld [vmem:[#allocation8 + $0x78] sm:$0xff]
    %v329 = vlaneseq
    %v330 = vshrl.u32 %v329, 7
    %v331 = vsub.s32 0, %v330
    %v332 = vrot.slane %v92, %v331
    %333 = vmatprep.subr.mxu0 0.0
    %334 = vmatpush1.msra.mxu0 %v328
    %335 = vmatprep.subr.mxu0 0.0
    %336 = vmatpush1.msra.mxu0 %v327
    %337 = vmatprep.subr.mxu0 0.0
    %338 = vmatpush1.msra.mxu0 %v326
    %339 = vmatprep.subr.mxu0 0.0
    %340 = vmatpush1.msra.mxu0 %v325
    %341 = vmatprep.subr.mxu0 0.0
    %342 = vmatpush1.msra.mxu0 %v324
    %343 = vmatprep.subr.mxu0 0.0
    %344 = vmatpush1.msra.mxu0 %v323
    %345 = vmatprep.subr.mxu0 0.0
    %346 = vmatpush1.msra.mxu0 %v322
    %347 = vmatprep.subr.mxu0 0.0
    %348 = vmatpush1.msra.mxu0 %v321
    %349 = vmatprep.subr.mxu0 0.0
    %350 = vmatpush1.msra.mxu0 %v320
    %351 = vmatprep.subr.mxu0 0.0
    %352 = vmatpush1.msra.mxu0 %v319
    %353 = vmatprep.subr.mxu0 0.0
    %354 = vmatpush1.msra.mxu0 %v318
    %355 = vmatprep.subr.mxu0 0.0
    %356 = vmatpush1.msra.mxu0 %v317
    %357 = vmatprep.subr.mxu0 0.0
    %358 = vmatpush1.msra.mxu0 %v316
    %359 = vmatprep.subr.mxu0 0.0
    %360 = vmatpush1.msra.mxu0 %v315
    %361 = vmatprep.subr.mxu0 0.0
    %362 = vmatpush1.msra.mxu0 %v314
    %363 = vmatprep.subr.mxu0 0.0
    %364 = vmatpush1.msra.mxu0 %v313
    %365 = vmatprep.subr.mxu0 0.0
    %366 = vmatpush2.msra.mxu0 0.0
    %367 = vmatprep.subr.mxu0 0.0
    %368 = vmatpush2.msra.mxu0 0.0
    %369 = vmatprep.subr.mxu0 0.0
    %370 = vmatpush2.msra.mxu0 0.0
    %371 = vmatprep.subr.mxu0 0.0
    %372 = vmatpush2.msra.mxu0 0.0
    %373 = vmatprep.subr.mxu0 0.0
    %374 = vmatpush2.msra.mxu0 0.0
    %375 = vmatprep.subr.mxu0 0.0
    %376 = vmatpush2.msra.mxu0 0.0
    %377 = vmatprep.subr.mxu0 0.0
    %378 = vmatpush2.msra.mxu0 0.0
    %379 = vmatprep.subr.mxu0 0.0
    %380 = vmatpush2.msra.mxu0 0.0
    %381 = vmatprep.subr.mxu0 0.0
    %382 = vmatpush2.msra.mxu0 0.0
    %383 = vmatprep.subr.mxu0 0.0
    %384 = vmatpush2.msra.mxu0 0.0
    %385 = vmatprep.subr.mxu0 0.0
    %386 = vmatpush2.msra.mxu0 0.0
    %387 = vmatprep.subr.mxu0 0.0
    %388 = vmatpush2.msra.mxu0 0.0
    %389 = vmatprep.subr.mxu0 0.0
    %390 = vmatpush2.msra.mxu0 0.0
    %391 = vmatprep.subr.mxu0 0.0
    %392 = vmatpush2.msra.mxu0 0.0
    %393 = vmatprep.subr.mxu0 0.0
    %394 = vmatpush2.msra.mxu0 0.0
    %395 = vmatprep.subr.mxu0 0.0
    %396 = vmatpush2.msra.mxu0 0.0
    %397 = vmatprep.mubr.f32.mxu0 0.0
    %398 = vmatmul.mubr.f32.gmra.mxu0 %v312
    %v399 = vpop.f32.mrf.mxu0
    %v400 = vadd.f32 %v332, %v399
    %v401 = vpop.f32.mrf.mxu0
    %402 = vdwg.mxu0
    %v403 = vtanh.pop %v400
    %404 = vst [vmem:[#allocation11] sm:$0xff] %v403
    // Predicated region
    $region42: #{tpu_custom_call.1} parent=1 // pred_check
      _
    $region43: #{tpu_custom_call.1} parent=1 // pred_check_branch
      %406 = sbr.rel (0) target = $region45
    $region44: #{tpu_custom_call.1} parent=1 // pred_region
      %s408 = ssub.s32 128, 128
      %409 = vsyncadd [#allocation4], %s408
      %s411 = sshll.u32 [#allocation11], 4
      %s412 = int_to_ptr.vmem [resolvable:$true] %s411
      %414 = dma.vmem_to_hbm [thread:$0]  %s412, 128, %s5, [#allocation4]
    $region45: #{tpu_custom_call.1} parent=1 // pred_fallthru
      _
    // Predicated region
    $region46: #{tpu_custom_call.1} parent=1 // pred_check
      _
    $region47: #{tpu_custom_call.1} parent=1 // pred_check_branch
      %416 = sbr.rel (0) target = $region49
    $region48: #{tpu_custom_call.1} parent=1 // pred_region
      %417 = dma.done [#allocation4], 128
    $region49: #{tpu_custom_call.1} parent=1 // pred_fallthru
      _
    %418 = vsyncpa [#allocation3], 1
    %419 = vsyncpa [#allocation6], 1
    %420 = vsyncpa [#allocation9], 1
    %421 = vsyncpa [#allocation4], 1

</llo_original>
